<compile_context>
chip_gen: v6e
topology: v6e:2x2x1
jax: 0.10.0
libtpu: 0.0.40
codegen_flags: <defaults>
</compile_context>

<pallas_src>
import functools

import jax
import jax.numpy as jnp
from jax.experimental import pallas as pl
from jax.experimental.pallas import tpu as pltpu

_LANES = 128
_MAX_TILE_ROWS = 1024        # 1024 x 128 x 4B = 512 KiB per input tile.


def _wmse_reduce_kernel(p_ref, t_ref, out_ref, *,
                        valid_rows, tile_rows, tiles_per_split, mask_needed):
    """Accumulate [fp_sq_sum, de_sq_sum, fp_count, de_count] as (8,128) partials.

    out_ref: (4, 8, 128) f32, resident across the inner (reduction) grid axis.
    """
    c = pl.program_id(0)          # core split (parallel)
    i = pl.program_id(1)          # tile within split (arbitrary / reduction)

    @pl.when(i == 0)
    def _init():
        out_ref[...] = jnp.zeros_like(out_ref)

    p = p_ref[...]                # (tile_rows, 128) f32
    t = t_ref[...]

    fp_mask = t < p
    de_mask = t > p

    if mask_needed:
        # Mask rows past the end of the real data: Pallas pads the last block with
        # unspecified values, and clamped out-of-range tail tiles must contribute zero.
        global_tile = c * tiles_per_split + i
        row_ids = global_tile * tile_rows + jax.lax.broadcasted_iota(
            jnp.int32, (tile_rows, _LANES), 0)
        valid = row_ids < valid_rows
        fp_mask = jnp.logical_and(fp_mask, valid)
        de_mask = jnp.logical_and(de_mask, valid)

    diff = t - p
    sq = diff * diff

    k = tile_rows // 8

    def fold(x):
        # (tile_rows, 128) -> (k, 8, 128) -> sum over the leading (untiled) dim:
        # pure VALU adds, result is one full (8, 128) vreg tile -> unmasked store.
        return x.reshape(k, 8, _LANES).sum(axis=0)

    out_ref[0] += fold(jnp.where(fp_mask, sq, 0.0))
    out_ref[1] += fold(jnp.where(de_mask, sq, 0.0))
    # Counts accumulated in f32: exact up to 2**24 per lane (~2.1e9 elements total).
    out_ref[2] += fold(fp_mask.astype(jnp.float32))
    out_ref[3] += fold(de_mask.astype(jnp.float32))


def _flatten_lane_major(x):
    flat = x.reshape(-1).astype(jnp.float32)
    rem = flat.shape[0] % _LANES
    if rem:
        # Rare path (numel not a multiple of 128): minimal pad so the (rows, 128)
        # reshape is possible.  Both tensors get the same constant, so padded elements
        # satisfy neither t < p nor t > p and contribute nothing to either selection.
        flat = jnp.pad(flat, (0, _LANES - rem))
    return flat.reshape(-1, _LANES)


@functools.partial(jax.jit, static_argnames=("alpha",))
def weighted_mse_loss(predicts, targets, alpha=None):
    p2d = _flatten_lane_major(predicts)
    t2d = _flatten_lane_major(targets)
    rows = p2d.shape[0]

    # Tile rows: multiple of 8 sublanes, as large as possible up to _MAX_TILE_ROWS.
    tile_rows = min(_MAX_TILE_ROWS, ((rows + 7) // 8) * 8)
    tiles_total = (rows + tile_rows - 1) // tile_rows
    num_splits = 2 if tiles_total >= 2 else 1        # 2 TCs on v7x; serial loop elsewhere
    tiles_per_split = (tiles_total + num_splits - 1) // num_splits
    max_tile = tiles_total - 1
    mask_needed = (rows % tile_rows != 0) or (tiles_total % num_splits != 0)

    kernel = functools.partial(
        _wmse_reduce_kernel,
        valid_rows=rows,
        tile_rows=tile_rows,
        tiles_per_split=tiles_per_split,
        mask_needed=mask_needed,
    )

    def in_map(c, i):
        # Clamp so an out-of-range split tail re-reads a valid block; its contribution
        # is zeroed by the in-kernel row mask.
        return (jnp.minimum(c * tiles_per_split + i, max_tile), 0)

    out = pl.pallas_call(
        kernel,
        out_shape=jax.ShapeDtypeStruct((num_splits, 4, 8, _LANES), jnp.float32),
        grid_spec=pltpu.PrefetchScalarGridSpec(
            num_scalar_prefetch=0,
            grid=(num_splits, tiles_per_split),
            in_specs=[
                pl.BlockSpec((tile_rows, _LANES), in_map),
                pl.BlockSpec((tile_rows, _LANES), in_map),
            ],
            out_specs=pl.BlockSpec((None, 4, 8, _LANES),
                                   lambda c, i: (c, 0, 0, 0)),
        ),
        compiler_params=pltpu.CompilerParams(
            dimension_semantics=("parallel", "arbitrary"),
            vmem_limit_bytes=32 * 1024 * 1024,
        ),
    )(p2d, t2d)

    # Tiny final fold: (num_splits, 4, 8, 128) -> 4 scalars (cheap XLA glue).
    totals = jnp.sum(out, axis=(0, 2, 3))
    fp_sum, de_sum, fp_cnt, de_cnt = totals[0], totals[1], totals[2], totals[3]

    # NaN if a selection is empty -- identical to torch's mean of an empty tensor.
    fp_mean = fp_sum / fp_cnt
    de_mean = de_sum / de_cnt

    if alpha:   # mirrors `if self.alpha:` (None or 0.0 -> dynamic alpha)
        a = jnp.float32(alpha)
    else:
        a = jnp.maximum(fp_sum, 1e-6) / jnp.maximum(de_sum + fp_sum, 1e-6)
    return a * fp_mean + (1.0 - a) * de_mean


def _reference_loss(predicts, targets, alpha=None):
    p = predicts.astype(jnp.float32)
    t = targets.astype(jnp.float32)
    sq = (t - p) ** 2
    fp_mask = t < p
    de_mask = t > p
    fp_sum = jnp.sum(jnp.where(fp_mask, sq, 0.0))
    de_sum = jnp.sum(jnp.where(de_mask, sq, 0.0))
    fp_cnt = jnp.sum(fp_mask).astype(jnp.float32)
    de_cnt = jnp.sum(de_mask).astype(jnp.float32)
    fp_mean = fp_sum / fp_cnt
    de_mean = de_sum / de_cnt
    if alpha:
        a = jnp.float32(alpha)
    else:
        a = jnp.maximum(fp_sum, 1e-6) / jnp.maximum(de_sum + fp_sum, 1e-6)
    return a * fp_mean + (1.0 - a) * de_mean


if __name__ == "__main__":
    key = jax.random.PRNGKey(0)
    kp, kt = jax.random.split(key)

    # Primary small NCHW case (single aligned tile, mask path off).
    predicts = jax.random.uniform(kp, (2, 4, 16, 16), dtype=jnp.float32)
    targets = jax.random.uniform(kt, (2, 4, 16, 16), dtype=jnp.float32)
    loss = weighted_mse_loss(predicts, targets)                 # dynamic alpha
    loss_fixed = weighted_mse_loss(predicts, targets, alpha=0.25)
    jax.block_until_ready((loss, loss_fixed))
    assert jnp.allclose(loss, _reference_loss(predicts, targets),
                        rtol=1e-4, atol=1e-6)
    assert jnp.allclose(loss_fixed, _reference_loss(predicts, targets, alpha=0.25),
                        rtol=1e-4, atol=1e-6)

    # Row count not a multiple of 8 -> exercises the in-kernel tail row mask.
    kp2, kt2 = jax.random.split(jax.random.PRNGKey(1))
    p2 = jax.random.uniform(kp2, (1, 4, 10, 16), dtype=jnp.float32)
    t2 = jax.random.uniform(kt2, (1, 4, 10, 16), dtype=jnp.float32)
    loss2 = weighted_mse_loss(p2, t2)
    jax.block_until_ready(loss2)
    assert jnp.allclose(loss2, _reference_loss(p2, t2), rtol=1e-4, atol=1e-6)

    # Multi-tile + 2-way split path (still modest size): 3200 rows of 128 lanes.
    kp3, kt3 = jax.random.split(jax.random.PRNGKey(2))
    p3 = jax.random.uniform(kp3, (2, 8, 160, 160), dtype=jnp.float32)
    t3 = jax.random.uniform(kt3, (2, 8, 160, 160), dtype=jnp.float32)
    loss3 = weighted_mse_loss(p3, t3)
    jax.block_until_ready(loss3)
    assert jnp.allclose(loss3, _reference_loss(p3, t3), rtol=1e-4, atol=1e-6)

    print("KERNEL_OK")
</pallas_src>

<mosaic_0001>
module attributes {stable_mosaic.version = 11 : i64} {
  func.func @_wmse_reduce_kernel(%arg0: i32, %arg1: i32, %arg2: memref<16x128xf32, #tpu.memory_space<vmem>>, %arg3: memref<16x128xf32, #tpu.memory_space<vmem>>, %arg4: memref<1x4x8x128xf32, #tpu.memory_space<vmem>>) attributes {dimension_semantics = [#tpu.dimension_semantics<parallel>, #tpu.dimension_semantics<arbitrary>], iteration_bounds = array<i64: 1, 1>, scalar_prefetch = 0 : i64, scratch_operands = 0 : i64, tpu.core_type = #tpu.core_type<tc>, window_params = [{transform_indices = @transform_0, window_bounds = array<i64: 16, 128>}, {transform_indices = @transform_1, window_bounds = array<i64: 16, 128>}, {transform_indices = @transform_2, window_bounds = array<i64: 1, 4, 8, 128>}]} {
    %c0_i32 = arith.constant 0 : i32
    %0 = arith.cmpi eq, %arg1, %c0_i32 : i32
    %1 = arith.extui %0 : i1 to i32
    %c0_i32_0 = arith.constant 0 : i32
    %2 = arith.cmpi ne, %1, %c0_i32_0 : i32
    scf.if %2 {
      %cst_38 = arith.constant 0.000000e+00 : f32
      %49 = vector.broadcast %cst_38 : f32 to vector<4x8x128xf32>
      %c0_39 = arith.constant 0 : index
      %c0_40 = arith.constant 0 : index
      %c0_41 = arith.constant 0 : index
      %c0_42 = arith.constant 0 : index
      %50 = vector.load %arg4[%c0_39, %c0_40, %c0_41, %c0_42] : memref<1x4x8x128xf32, #tpu.memory_space<vmem>>, vector<1x4x8x128xf32>
      %51 = vector.shape_cast %50 : vector<1x4x8x128xf32> to vector<4x8x128xf32>
      %52 = vector.shape_cast %49 : vector<4x8x128xf32> to vector<1x4x8x128xf32>
      tpu.vector_store %arg4[%c0_39, %c0_40, %c0_41, %c0_42], %52 {strides = array<i32>} : memref<1x4x8x128xf32, #tpu.memory_space<vmem>>, vector<1x4x8x128xf32>,
    } else {
    }
    %c0 = arith.constant 0 : index
    %c0_1 = arith.constant 0 : index
    %3 = vector.load %arg2[%c0, %c0_1] : memref<16x128xf32, #tpu.memory_space<vmem>>, vector<16x128xf32>
    %c0_2 = arith.constant 0 : index
    %c0_3 = arith.constant 0 : index
    %4 = vector.load %arg3[%c0_2, %c0_3] : memref<16x128xf32, #tpu.memory_space<vmem>>, vector<16x128xf32>
    %5 = arith.cmpf olt, %4, %3 : vector<16x128xf32>
    %6 = arith.cmpf ogt, %4, %3 : vector<16x128xf32>
    %7 = arith.subf %4, %3 : vector<16x128xf32>
    %8 = arith.mulf %7, %7 : vector<16x128xf32>
    %c0_4 = arith.constant 0 : index
    %c0_5 = arith.constant 0 : index
    %c0_6 = arith.constant 0 : index
    %c0_7 = arith.constant 0 : index
    %9 = vector.load %arg4[%c0_4, %c0_5, %c0_6, %c0_7] : memref<1x4x8x128xf32, #tpu.memory_space<vmem>>, vector<1x1x8x128xf32>
    %10 = vector.shape_cast %9 : vector<1x1x8x128xf32> to vector<8x128xf32>
    %cst = arith.constant 0.000000e+00 : f32
    %11 = vector.broadcast %cst : f32 to vector<16x128xf32>
    %12 = arith.select %5, %8, %11 : vector<16x128xi1>, vector<16x128xf32>
    %13 = vector.shape_cast %12 : vector<16x128xf32> to vector<2x8x128xf32>
    %cst_8 = arith.constant dense<0.000000e+00> : vector<8x128xf32>
    %14 = vector.multi_reduction <add>, %13, %cst_8 [0] : vector<2x8x128xf32> to vector<8x128xf32>
    %15 = arith.addf %10, %14 : vector<8x128xf32>
    %c0_9 = arith.constant 0 : index
    %c0_10 = arith.constant 0 : index
    %c0_11 = arith.constant 0 : index
    %c0_12 = arith.constant 0 : index
    %16 = vector.load %arg4[%c0_9, %c0_10, %c0_11, %c0_12] : memref<1x4x8x128xf32, #tpu.memory_space<vmem>>, vector<1x1x8x128xf32>
    %17 = vector.shape_cast %16 : vector<1x1x8x128xf32> to vector<8x128xf32>
    %18 = vector.shape_cast %15 : vector<8x128xf32> to vector<1x1x8x128xf32>
    tpu.vector_store %arg4[%c0_9, %c0_10, %c0_11, %c0_12], %18 {strides = array<i32>} : memref<1x4x8x128xf32, #tpu.memory_space<vmem>>, vector<1x1x8x128xf32>,
    %c0_13 = arith.constant 0 : index
    %c1 = arith.constant 1 : index
    %c0_14 = arith.constant 0 : index
    %c0_15 = arith.constant 0 : index
    %19 = vector.load %arg4[%c0_13, %c1, %c0_14, %c0_15] : memref<1x4x8x128xf32, #tpu.memory_space<vmem>>, vector<1x1x8x128xf32>
    %20 = vector.shape_cast %19 : vector<1x1x8x128xf32> to vector<8x128xf32>
    %cst_16 = arith.constant 0.000000e+00 : f32
    %21 = vector.broadcast %cst_16 : f32 to vector<16x128xf32>
    %22 = arith.select %6, %8, %21 : vector<16x128xi1>, vector<16x128xf32>
    %23 = vector.shape_cast %22 : vector<16x128xf32> to vector<2x8x128xf32>
    %cst_17 = arith.constant dense<0.000000e+00> : vector<8x128xf32>
    %24 = vector.multi_reduction <add>, %23, %cst_17 [0] : vector<2x8x128xf32> to vector<8x128xf32>
    %25 = arith.addf %20, %24 : vector<8x128xf32>
    %c0_18 = arith.constant 0 : index
    %c1_19 = arith.constant 1 : index
    %c0_20 = arith.constant 0 : index
    %c0_21 = arith.constant 0 : index
    %26 = vector.load %arg4[%c0_18, %c1_19, %c0_20, %c0_21] : memref<1x4x8x128xf32, #tpu.memory_space<vmem>>, vector<1x1x8x128xf32>
    %27 = vector.shape_cast %26 : vector<1x1x8x128xf32> to vector<8x128xf32>
    %28 = vector.shape_cast %25 : vector<8x128xf32> to vector<1x1x8x128xf32>
    tpu.vector_store %arg4[%c0_18, %c1_19, %c0_20, %c0_21], %28 {strides = array<i32>} : memref<1x4x8x128xf32, #tpu.memory_space<vmem>>, vector<1x1x8x128xf32>,
    %c0_22 = arith.constant 0 : index
    %c2 = arith.constant 2 : index
    %c0_23 = arith.constant 0 : index
    %c0_24 = arith.constant 0 : index
    %29 = vector.load %arg4[%c0_22, %c2, %c0_23, %c0_24] : memref<1x4x8x128xf32, #tpu.memory_space<vmem>>, vector<1x1x8x128xf32>
    %30 = vector.shape_cast %29 : vector<1x1x8x128xf32> to vector<8x128xf32>
    %31 = arith.extui %5 : vector<16x128xi1> to vector<16x128xi32>
    %32 = arith.sitofp %31 : vector<16x128xi32> to vector<16x128xf32>
    %33 = vector.shape_cast %32 : vector<16x128xf32> to vector<2x8x128xf32>
    %cst_25 = arith.constant dense<0.000000e+00> : vector<8x128xf32>
    %34 = vector.multi_reduction <add>, %33, %cst_25 [0] : vector<2x8x128xf32> to vector<8x128xf32>
    %35 = arith.addf %30, %34 : vector<8x128xf32>
    %c0_26 = arith.constant 0 : index
    %c2_27 = arith.constant 2 : index
    %c0_28 = arith.constant 0 : index
    %c0_29 = arith.constant 0 : index
    %36 = vector.load %arg4[%c0_26, %c2_27, %c0_28, %c0_29] : memref<1x4x8x128xf32, #tpu.memory_space<vmem>>, vector<1x1x8x128xf32>
    %37 = vector.shape_cast %36 : vector<1x1x8x128xf32> to vector<8x128xf32>
    %38 = vector.shape_cast %35 : vector<8x128xf32> to vector<1x1x8x128xf32>
    tpu.vector_store %arg4[%c0_26, %c2_27, %c0_28, %c0_29], %38 {strides = array<i32>} : memref<1x4x8x128xf32, #tpu.memory_space<vmem>>, vector<1x1x8x128xf32>,
    %c0_30 = arith.constant 0 : index
    %c3 = arith.constant 3 : index
    %c0_31 = arith.constant 0 : index
    %c0_32 = arith.constant 0 : index
    %39 = vector.load %arg4[%c0_30, %c3, %c0_31, %c0_32] : memref<1x4x8x128xf32, #tpu.memory_space<vmem>>, vector<1x1x8x128xf32>
    %40 = vector.shape_cast %39 : vector<1x1x8x128xf32> to vector<8x128xf32>
    %41 = arith.extui %6 : vector<16x128xi1> to vector<16x128xi32>
    %42 = arith.sitofp %41 : vector<16x128xi32> to vector<16x128xf32>
    %43 = vector.shape_cast %42 : vector<16x128xf32> to vector<2x8x128xf32>
    %cst_33 = arith.constant dense<0.000000e+00> : vector<8x128xf32>
    %44 = vector.multi_reduction <add>, %43, %cst_33 [0] : vector<2x8x128xf32> to vector<8x128xf32>
    %45 = arith.addf %40, %44 : vector<8x128xf32>
    %c0_34 = arith.constant 0 : index
    %c3_35 = arith.constant 3 : index
    %c0_36 = arith.constant 0 : index
    %c0_37 = arith.constant 0 : index
    %46 = vector.load %arg4[%c0_34, %c3_35, %c0_36, %c0_37] : memref<1x4x8x128xf32, #tpu.memory_space<vmem>>, vector<1x1x8x128xf32>
    %47 = vector.shape_cast %46 : vector<1x1x8x128xf32> to vector<8x128xf32>
    %48 = vector.shape_cast %45 : vector<8x128xf32> to vector<1x1x8x128xf32>
    tpu.vector_store %arg4[%c0_34, %c3_35, %c0_36, %c0_37], %48 {strides = array<i32>} : memref<1x4x8x128xf32, #tpu.memory_space<vmem>>, vector<1x1x8x128xf32>,
    return
  }
  func.func @transform_0(%arg0: i32, %arg1: i32) -> (i32, i32) {
    %c1_i32 = arith.constant 1 : i32
    %0 = arith.muli %arg0, %c1_i32 : i32
    %1 = arith.addi %0, %arg1 : i32
    %c0_i32 = arith.constant 0 : i32
    %2 = arith.minsi %1, %c0_i32 : i32
    %c0_i32_0 = arith.constant 0 : i32
    %c0_i32_1 = arith.constant 0 : i32
    return %2, %c0_i32_0 : i32, i32
  }
  func.func @transform_1(%arg0: i32, %arg1: i32) -> (i32, i32) {
    %c1_i32 = arith.constant 1 : i32
    %0 = arith.muli %arg0, %c1_i32 : i32
    %1 = arith.addi %0, %arg1 : i32
    %c0_i32 = arith.constant 0 : i32
    %2 = arith.minsi %1, %c0_i32 : i32
    %c0_i32_0 = arith.constant 0 : i32
    %c0_i32_1 = arith.constant 0 : i32
    return %2, %c0_i32_0 : i32, i32
  }
  func.func @transform_2(%arg0: i32, %arg1: i32) -> (i32, i32, i32, i32) {
    %c0_i32 = arith.constant 0 : i32
    %c0_i32_0 = arith.constant 0 : i32
    %c0_i32_1 = arith.constant 0 : i32
    %c0_i32_2 = arith.constant 0 : i32
    return %arg0, %c0_i32, %c0_i32_0, %c0_i32_1 : i32, i32, i32, i32
  }
}

</mosaic_0001>

<llo_original>
// kernel: weighted_mse_loss.1
$region0: #{weighted_mse_loss.1}
  #allocation0 [shape = 'u32[]', space=smem, size = 0x4, offset = 0x4, fixed_abs, tag = 'smem constant byte address 0x4 - core index']
  #allocation1 [shape = 'u32[144,128]{1,0:T(1,128)}', space=vmem, size = 0x12000, scoped, tag = 'internal scratch']
  %s0 = inlined_call_operand.vmem [shape: f32[16,128], index: 0, kind: input, shape index: {}]
  %s1 = inlined_call_operand.vmem [shape: f32[16,128], index: 1, kind: input, shape index: {}]
  %s2 = inlined_call_operand.vmem [shape: f32[1,4,8,128], index: 2, kind: output, shape index: {}]
  %s3 = sld [smem:[#allocation0]]
  $region22: #{weighted_mse_loss.1} parent=0
    _
  %s5 = ssub.s32 1, %s3
  %s6 = scalar_select 0, %s5, %s3
  // Predicated region
  $region2: #{weighted_mse_loss.1} parent=0 // pred_check
    _
  $region3: #{weighted_mse_loss.1} parent=0 // pred_check_branch
    %8 = sbr.rel (0) target = $region5
  $region4: #{weighted_mse_loss.1} parent=0 // pred_region
    %s9 = sadd.s32 0, 0
    %p10 = scmp.lt.s32.totalorder %s9, 0
    %s11 = scalar_select %p10, %s9, 0
    %s12 = smul.u32 2, %s11
    %p13 = scmp.lt.s32.totalorder %s12, 1
    %s14 = scalar_select %p13, %s12, 1
    %s15 = smul.addr %s14, 8
    %s16 = scalar_lea.vmem %s0, %s15
    %s17 = sadd.s32 0, 0
    %p18 = scmp.lt.s32.totalorder %s17, 0
    %s19 = scalar_select %p18, %s17, 0
    %s20 = smul.u32 2, %s19
  $region5: #{weighted_mse_loss.1} parent=0 // pred_fallthru
    _
  // Predicated region
  $region6: #{weighted_mse_loss.1} parent=0 // pred_check
    _
  $region7: #{weighted_mse_loss.1} parent=0 // pred_check_branch
    %22 = sbr.rel (0) target = $region9
  $region8: #{weighted_mse_loss.1} parent=0 // pred_region
    %s23 = sadd.s32 0, 0
    %p24 = scmp.lt.s32.totalorder %s23, 0
    %s25 = scalar_select %p24, %s23, 0
    %s26 = smul.u32 2, %s25
    %p27 = scmp.lt.s32.totalorder %s26, 1
    %s28 = scalar_select %p27, %s26, 1
    %s29 = smul.addr %s28, 8
    %s30 = scalar_lea.vmem %s1, %s29
    %s31 = sadd.s32 0, 0
    %p32 = scmp.lt.s32.totalorder %s31, 0
    %s33 = scalar_select %p32, %s31, 0
    %s34 = smul.u32 2, %s33
  $region9: #{weighted_mse_loss.1} parent=0 // pred_fallthru
    _
  %s35 = sadd.s32 0, 0
  %p36 = scmp.lt.s32.totalorder %s35, 0
  %s37 = scalar_select %p36, %s35, 0
  %s38 = smul.u32 2, %s37
  %p39 = scmp.lt.s32.totalorder %s38, 1
  %s40 = scalar_select %p39, %s38, 1
  %s41 = smul.addr %s40, 8
  %s42 = scalar_lea.vmem %s0, %s41
  %s43 = sadd.s32 0, 0
  %p44 = scmp.lt.s32.totalorder %s43, 0
  %s45 = scalar_select %p44, %s43, 0
  %s46 = smul.u32 2, %s45
  %p47 = scmp.lt.s32.totalorder %s46, 1
  %s48 = scalar_select %p47, %s46, 1
  %s49 = smul.addr %s48, 8
  %s50 = scalar_lea.vmem %s1, %s49
  %s51 = sadd.s32 0, 0
  %p52 = scmp.lt.s32.totalorder %s51, 0
  %s53 = scalar_select %p52, %s51, 0
  %s54 = smul.u32 2, %s53
  %p55 = scmp.lt.s32.totalorder %s54, 1
  %s56 = scalar_select %p55, %s54, 1
  %s57 = smul.addr %s56, 8
  %s58 = scalar_lea.vmem %s0, %s57
  %s59 = sadd.s32 0, 0
  %p60 = scmp.lt.s32.totalorder %s59, 0
  %s61 = scalar_select %p60, %s59, 0
  %s62 = smul.u32 2, %s61
  %s63 = sadd.s32 0, 0
  %p64 = scmp.lt.s32.totalorder %s63, 0
  %s65 = scalar_select %p64, %s63, 0
  %s66 = smul.u32 2, %s65
  %p67 = scmp.lt.s32.totalorder %s66, 1
  %s68 = scalar_select %p67, %s66, 1
  %s69 = smul.addr %s68, 8
  %s70 = scalar_lea.vmem %s1, %s69
  %s71 = sadd.s32 0, 0
  %p72 = scmp.lt.s32.totalorder %s71, 0
  %s73 = scalar_select %p72, %s71, 0
  %s74 = smul.u32 2, %s73
  %p75 = scmp.eq.s32.totalorder 0, 0
  // Predicated region
  $region10: #{weighted_mse_loss.1} parent=0 // pred_check
    %p76 = pneg %p75
  $region11: #{weighted_mse_loss.1} parent=0 // pred_check_branch
    %78 = sbr.rel (%p76) target = $region13
  $region12: #{weighted_mse_loss.1} parent=0 // pred_region
    %79 = vst [vmem:[%s2] sm:$0xff] 0.0
    %80 = vst [vmem:[%s2 + $0x8] sm:$0xff] 0.0
    %81 = vst [vmem:[%s2 + $0x10] sm:$0xff] 0.0
    %82 = vst [vmem:[%s2 + $0x18] sm:$0xff] 0.0
  $region13: #{weighted_mse_loss.1} parent=0 // pred_fallthru
    _
  %v83 = vld [vmem:[%s58] sm:$0xff]
  %v84 = vld [vmem:[%s58 + $0x8] sm:$0xff]
  %v85 = vld [vmem:[%s70] sm:$0xff]
  %v86 = vld [vmem:[%s70 + $0x8] sm:$0xff]
  %vm87 = vcmp.lt.f32.partialorder %v85, %v83
  %vm88 = vcmp.lt.f32.partialorder %v86, %v84
  %vm89 = vcmp.gt.f32.partialorder %v85, %v83
  %vm90 = vcmp.gt.f32.partialorder %v86, %v84
  %v91 = vsub.f32 %v85, %v83
  %v92 = vsub.f32 %v86, %v84
  %v93 = vmul.f32 %v91, %v91
  %v94 = vmul.f32 %v92, %v92
  %v95 = vld [vmem:[%s2] sm:$0xff]
  %v96 = vsel %vm87, %v93, 0.0
  %v97 = vsel %vm88, %v94, 0.0
  %v98 = vadd.f32 %v96, %v97
  %v99 = vadd.f32 %v95, %v98
  %100 = vst [vmem:[%s2] sm:$0xff] %v99
  %s101 = scalar_lea.vmem %s2, 8
  %v102 = vld [vmem:[%s101] sm:$0xff]
  %v103 = vsel %vm89, %v93, 0.0
  %v104 = vsel %vm90, %v94, 0.0
  %v105 = vadd.f32 %v103, %v104
  %v106 = vadd.f32 %v102, %v105
  %107 = vst [vmem:[%s101] sm:$0xff] %v106
  %s108 = scalar_lea.vmem %s2, 16
  %v109 = vld [vmem:[%s108] sm:$0xff]
  %v110 = vsel %vm87, 1, 0
  %v111 = vsel %vm88, 1, 0
  %v112 = vcvt.s32.f32 %v110
  %v113 = vcvt.s32.f32 %v111
  %v114 = vadd.f32 %v112, %v113
  %v115 = vadd.f32 %v109, %v114
  %116 = vst [vmem:[%s108] sm:$0xff] %v115
  %s117 = scalar_lea.vmem %s2, 24
  %v118 = vld [vmem:[%s117] sm:$0xff]
  %v119 = vsel %vm89, 1, 0
  %v120 = vsel %vm90, 1, 0
  %v121 = vcvt.s32.f32 %v119
  %v122 = vcvt.s32.f32 %v120
  %v123 = vadd.f32 %v121, %v122
  %v124 = vadd.f32 %v118, %v123
  %125 = vst [vmem:[%s117] sm:$0xff] %v124
  // Predicated region
  $region14: #{weighted_mse_loss.1} parent=0 // pred_check
    _
  $region15: #{weighted_mse_loss.1} parent=0 // pred_check_branch
    %127 = sbr.rel (0) target = $region17
  $region16: #{weighted_mse_loss.1} parent=0 // pred_region
    _
  $region17: #{weighted_mse_loss.1} parent=0 // pred_fallthru
    _
  // Predicated region
  $region18: #{weighted_mse_loss.1} parent=0 // pred_check
    _
  $region19: #{weighted_mse_loss.1} parent=0 // pred_check_branch
    %129 = sbr.rel (0) target = $region21
  $region20: #{weighted_mse_loss.1} parent=0 // pred_region
    _
  $region21: #{weighted_mse_loss.1} parent=0 // pred_fallthru
    _

</llo_original>
